<compile_context>
chip_gen: v6e
topology: v6e:2x2x1
jax: 0.10.0
libtpu: 0.0.40
codegen_flags: <defaults>
</compile_context>

<pallas_src>
import functools

import jax
import jax.numpy as jnp
from jax import lax
from jax.experimental import pallas as pl
from jax.experimental.pallas import tpu as pltpu


def _normalize_cast_kernel(xi_ref, xj_ref, zi_ref, zj_ref):
    """L2-normalize rows (F.normalize(dim=1)) and cast to the matmul dtype."""
    def norm_one(x_ref, z_ref):
        x = x_ref[...].astype(jnp.float32)
        sq = jnp.sum(x * x, axis=1, keepdims=True)
        # x / max(||x||, 1e-12) == x * rsqrt(max(||x||^2, 1e-24))
        z_ref[...] = (x * lax.rsqrt(jnp.maximum(sq, 1e-24))).astype(z_ref.dtype)

    norm_one(xi_ref, zi_ref)
    norm_one(xj_ref, zj_ref)


def _nt_xent_kernel(zi_row_ref, zj_row_ref, zi_col_ref, zj_col_ref,
                    out_ref, lhs, rhs, acc, *, inv_t, exp_dtype):
    """Online-denominator NT-Xent over one (row-block, col-block) grid step."""
    c = pl.program_id(1)
    num_c = pl.num_programs(1)
    TM = zi_row_ref.shape[0]
    TN = zi_col_ref.shape[0]

    @pl.when(c == 0)
    def _init():
        # Stacked (2*TM, D) LHS, built once per row sweep (already matmul_dtype).
        lhs[0:TM, :] = zi_row_ref[...]
        lhs[TM:2 * TM, :] = zj_row_ref[...]
        acc[...] = jnp.zeros_like(acc)

    # Stacked (2*TN, D) RHS for this column step.
    rhs[0:TN, :] = zi_col_ref[...]
    rhs[TN:2 * TN, :] = zj_col_ref[...]

    # Single fused (2TM, D) x (D, 2TN) matmul; contract feature dims directly
    # (A @ B.T without materializing a transpose).
    s = lax.dot_general(lhs[...], rhs[...], (((1,), (1,)), ((), ())),
                        preferred_element_type=jnp.float32)
    e = jnp.exp((s * inv_t).astype(exp_dtype)).astype(jnp.float32)
    # Full row-sums (diagonal included; removed analytically at finalize).
    acc[...] += jnp.sum(e, axis=1, keepdims=True)

    @pl.when(c == num_c - 1)
    def _finalize():
        zi = lhs[0:TM, :].astype(jnp.float32)
        zj = lhs[TM:2 * TM, :].astype(jnp.float32)
        # positives[k] = sim[k, k+B] = sim[k+B, k] = z_i[k] . z_j[k]
        pos = jnp.sum(zi * zj, axis=1, keepdims=True)
        # Diagonal correction exp(||z_k||^2 / t), from the same matmul_dtype rows
        # the MXU consumed above, so it matches the accumulated diagonal.
        self_i = jnp.sum(zi * zi, axis=1, keepdims=True)
        self_j = jnp.sum(zj * zj, axis=1, keepdims=True)
        den_i = acc[0:TM, :] - jnp.exp(self_i * inv_t)
        den_j = acc[TM:2 * TM, :] - jnp.exp(self_j * inv_t)
        nom = jnp.exp(pos * inv_t)
        # -log(nom / (nom + den)) == log(nom + den) - pos/t   (fused; no divide)
        row_loss = jnp.log(nom + den_i) + jnp.log(nom + den_j) - 2.0 * pos * inv_t
        out_ref[0, 0, 0] = jnp.sum(row_loss)


def _pick_tile(b, cap):
    """Largest multiple-of-8 divisor of b that is <= cap; fall back to b itself."""
    if b <= cap:
        return b
    t = cap - (cap % 8)
    while t >= 8:
        if b % t == 0:
            return t
        t -= 8
    return b


def contrastive_loss(emb_i, emb_j, temperature=0.5, *, tm=None, tn=None,
                     matmul_dtype=jnp.bfloat16, exp_dtype=jnp.float32):
    """Pallas TPU implementation of TReS ContrastiveLoss.forward."""
    assert emb_i.shape == emb_j.shape and emb_i.ndim == 2
    B, D = emb_i.shape
    # TM raised toward 512 (review: AI ~ TM flop/byte; needs >> 256 to be
    # MXU-bound on v6e/v7x once operands are bf16).  TN stays <= 256.
    TM = int(tm) if tm is not None else _pick_tile(B, 512)
    TN = int(tn) if tn is not None else _pick_tile(B, 256)
    assert B % TM == 0 and B % TN == 0, (B, TM, TN)
    R, C = B // TM, B // TN

    # --- Pre-pass: normalize + cast to matmul_dtype exactly once. ------------
    TP = _pick_tile(B, 1024)
    z_i, z_j = pl.pallas_call(
        _normalize_cast_kernel,
        out_shape=(jax.ShapeDtypeStruct((B, D), matmul_dtype),
                   jax.ShapeDtypeStruct((B, D), matmul_dtype)),
        grid_spec=pltpu.PrefetchScalarGridSpec(
            num_scalar_prefetch=0,
            grid=(B // TP,),
            in_specs=[pl.BlockSpec((TP, D), lambda r: (r, 0)),
                      pl.BlockSpec((TP, D), lambda r: (r, 0))],
            out_specs=[pl.BlockSpec((TP, D), lambda r: (r, 0)),
                       pl.BlockSpec((TP, D), lambda r: (r, 0))],
        ),
        compiler_params=pltpu.CompilerParams(
            dimension_semantics=("parallel",)),
    )(emb_i, emb_j)

    # --- Main grid: online denominator over column blocks. -------------------
    kernel = functools.partial(
        _nt_xent_kernel, inv_t=1.0 / float(temperature), exp_dtype=exp_dtype)

    partials = pl.pallas_call(
        kernel,
        out_shape=jax.ShapeDtypeStruct((R, 1, 1), jnp.float32),
        grid_spec=pltpu.PrefetchScalarGridSpec(
            num_scalar_prefetch=0,
            grid=(R, C),
            in_specs=[
                pl.BlockSpec((TM, D), lambda r, c: (r, 0)),  # z_i row block
                pl.BlockSpec((TM, D), lambda r, c: (r, 0)),  # z_j row block
                pl.BlockSpec((TN, D), lambda r, c: (c, 0)),  # z_i column block
                pl.BlockSpec((TN, D), lambda r, c: (c, 0)),  # z_j column block
            ],
            out_specs=pl.BlockSpec((1, 1, 1), lambda r, c: (r, 0, 0)),
            scratch_shapes=[
                pltpu.VMEM((2 * TM, D), matmul_dtype),  # stacked LHS (per row sweep)
                pltpu.VMEM((2 * TN, D), matmul_dtype),  # stacked RHS (per step)
                pltpu.VMEM((2 * TM, 1), jnp.float32),   # denominator accumulator
            ],
        ),
        compiler_params=pltpu.CompilerParams(
            dimension_semantics=("parallel", "arbitrary"),
            vmem_limit_bytes=48 * 1024 * 1024,
        ),
    )(z_i, z_j, z_i, z_j)

    # Tiny per-row-block partial sums; final scalar reduction in XLA.
    return jnp.sum(partials) / (2.0 * B)


def _reference_loss(emb_i, emb_j, temperature=0.5):
    # Pure-JAX reference mirroring the PyTorch module, for verification.
    B = emb_i.shape[0]

    def l2n(x):
        return x / jnp.maximum(jnp.linalg.norm(x, axis=1, keepdims=True), 1e-12)

    z = jnp.concatenate([l2n(emb_i), l2n(emb_j)], axis=0)
    sim = z @ z.T
    sim_ij = jnp.diagonal(sim, offset=B)
    sim_ji = jnp.diagonal(sim, offset=-B)
    positives = jnp.concatenate([sim_ij, sim_ji], axis=0)
    mask = 1.0 - jnp.eye(2 * B)
    nom = jnp.exp(positives / temperature)
    denom = jnp.sum(mask * jnp.exp(sim / temperature), axis=1)
    return jnp.sum(-jnp.log(nom / (nom + denom))) / (2 * B)


if __name__ == "__main__":
    temperature = 0.5  # register_buffer default
    base_key = jax.random.PRNGKey(0)

    # (batch, hidden, tm, tn, matmul_dtype, exp_dtype, tolerance)
    configs = [
        # module-sized tiny shape (batch_size=4), single grid step, bf16 MXU operands
        (4, 32, None, None, jnp.bfloat16, jnp.float32, 1e-2),
        # exercises the tiled online-denominator path: grid = (2, 2)
        (16, 64, 8, 8, jnp.bfloat16, jnp.float32, 1e-2),
        # f32 MXU path, tight check against the reference
        (16, 64, 8, 8, jnp.float32, jnp.float32, 1e-4),
        # bf16-exp path (v6e/v7x EUP optimization), looser tolerance
        (16, 64, 8, 8, jnp.bfloat16, jnp.bfloat16, 5e-2),
    ]

    for (bsz, hid, tm, tn, mm_dtype, e_dtype, tol) in configs:
        k1, k2 = jax.random.split(jax.random.fold_in(base_key, bsz * 1000 + hid))
        emb_i = jax.random.normal(k1, (bsz, hid), dtype=jnp.float32)
        emb_j = jax.random.normal(k2, (bsz, hid), dtype=jnp.float32)

        loss = contrastive_loss(emb_i, emb_j, temperature, tm=tm, tn=tn,
                                matmul_dtype=mm_dtype, exp_dtype=e_dtype)
        loss = jax.block_until_ready(loss)
        ref = jax.block_until_ready(_reference_loss(emb_i, emb_j, temperature))

        assert jnp.isfinite(loss), "loss is not finite"
        assert abs(float(loss) - float(ref)) < tol, (bsz, hid, float(loss), float(ref))

    print("KERNEL_OK")
</pallas_src>

<mosaic_0001>
module attributes {stable_mosaic.version = 11 : i64} {
  func.func @_normalize_cast_kernel(%arg0: i32, %arg1: memref<4x32xf32, #tpu.memory_space<vmem>>, %arg2: memref<4x32xf32, #tpu.memory_space<vmem>>, %arg3: memref<4x32xbf16, #tpu.memory_space<vmem>>, %arg4: memref<4x32xbf16, #tpu.memory_space<vmem>>) attributes {dimension_semantics = [#tpu.dimension_semantics<parallel>], iteration_bounds = array<i64: 1>, scalar_prefetch = 0 : i64, scratch_operands = 0 : i64, tpu.core_type = #tpu.core_type<tc>, window_params = [{transform_indices = @transform_0, window_bounds = array<i64: 4, 32>}, {transform_indices = @transform_1, window_bounds = array<i64: 4, 32>}, {transform_indices = @transform_2, window_bounds = array<i64: 4, 32>}, {transform_indices = @transform_3, window_bounds = array<i64: 4, 32>}]} {
    %c0 = arith.constant 0 : index
    %c0_0 = arith.constant 0 : index
    %0 = vector.load %arg1[%c0, %c0_0] : memref<4x32xf32, #tpu.memory_space<vmem>>, vector<4x32xf32>
    %1 = arith.mulf %0, %0 : vector<4x32xf32>
    %cst = arith.constant dense<0.000000e+00> : vector<4xf32>
    %2 = vector.multi_reduction <add>, %1, %cst [1] : vector<4x32xf32> to vector<4xf32>
    %3 = vector.shape_cast %2 : vector<4xf32> to vector<4x1xf32>
    %cst_1 = arith.constant 1.000000e-24 : f32
    %4 = vector.broadcast %cst_1 : f32 to vector<4x1xf32>
    %5 = arith.maximumf %3, %4 : vector<4x1xf32>
    %6 = math.rsqrt %5 : vector<4x1xf32>
    %7 = vector.broadcast %6 : vector<4x1xf32> to vector<4x32xf32>
    %8 = arith.mulf %0, %7 : vector<4x32xf32>
    %9 = arith.truncf %8 : vector<4x32xf32> to vector<4x32xbf16>
    %c0_2 = arith.constant 0 : index
    %c0_3 = arith.constant 0 : index
    %10 = vector.load %arg3[%c0_2, %c0_3] : memref<4x32xbf16, #tpu.memory_space<vmem>>, vector<4x32xbf16>
    tpu.vector_store %arg3[%c0_2, %c0_3], %9 {strides = array<i32>} : memref<4x32xbf16, #tpu.memory_space<vmem>>, vector<4x32xbf16>,
    %c0_4 = arith.constant 0 : index
    %c0_5 = arith.constant 0 : index
    %11 = vector.load %arg2[%c0_4, %c0_5] : memref<4x32xf32, #tpu.memory_space<vmem>>, vector<4x32xf32>
    %12 = arith.mulf %11, %11 : vector<4x32xf32>
    %cst_6 = arith.constant dense<0.000000e+00> : vector<4xf32>
    %13 = vector.multi_reduction <add>, %12, %cst_6 [1] : vector<4x32xf32> to vector<4xf32>
    %14 = vector.shape_cast %13 : vector<4xf32> to vector<4x1xf32>
    %cst_7 = arith.constant 1.000000e-24 : f32
    %15 = vector.broadcast %cst_7 : f32 to vector<4x1xf32>
    %16 = arith.maximumf %14, %15 : vector<4x1xf32>
    %17 = math.rsqrt %16 : vector<4x1xf32>
    %18 = vector.broadcast %17 : vector<4x1xf32> to vector<4x32xf32>
    %19 = arith.mulf %11, %18 : vector<4x32xf32>
    %20 = arith.truncf %19 : vector<4x32xf32> to vector<4x32xbf16>
    %c0_8 = arith.constant 0 : index
    %c0_9 = arith.constant 0 : index
    %21 = vector.load %arg4[%c0_8, %c0_9] : memref<4x32xbf16, #tpu.memory_space<vmem>>, vector<4x32xbf16>
    tpu.vector_store %arg4[%c0_8, %c0_9], %20 {strides = array<i32>} : memref<4x32xbf16, #tpu.memory_space<vmem>>, vector<4x32xbf16>,
    return
  }
  func.func @transform_0(%arg0: i32) -> (i32, i32) {
    %c0_i32 = arith.constant 0 : i32
    %c0_i32_0 = arith.constant 0 : i32
    return %arg0, %c0_i32 : i32, i32
  }
  func.func @transform_1(%arg0: i32) -> (i32, i32) {
    %c0_i32 = arith.constant 0 : i32
    %c0_i32_0 = arith.constant 0 : i32
    return %arg0, %c0_i32 : i32, i32
  }
  func.func @transform_2(%arg0: i32) -> (i32, i32) {
    %c0_i32 = arith.constant 0 : i32
    %c0_i32_0 = arith.constant 0 : i32
    return %arg0, %c0_i32 : i32, i32
  }
  func.func @transform_3(%arg0: i32) -> (i32, i32) {
    %c0_i32 = arith.constant 0 : i32
    %c0_i32_0 = arith.constant 0 : i32
    return %arg0, %c0_i32 : i32, i32
  }
}

</mosaic_0001>

<llo_original>
// kernel: tpu_custom_call.1
$region0: #{tpu_custom_call.1}
  #allocation0 [shape = 'u32[]', space=smem, size = 0x4, offset = 0x4, fixed_abs, tag = 'smem constant byte address 0x4 - core index']
  #allocation1 [shape = 'u32[144,128]{1,0:T(1,128)}', space=vmem, size = 0x12000, scoped, tag = 'internal scratch']
  %s0 = inlined_call_operand.hbm [shape: f32[4,32], index: 0, kind: input, shape index: {}]
  %s1 = inlined_call_operand.hbm [shape: f32[4,32], index: 1, kind: input, shape index: {}]
  %s2 = inlined_call_operand.hbm [shape: bf16[4,32], index: 2, kind: output, shape index: {0}]
  %s3 = inlined_call_operand.hbm [shape: bf16[4,32], index: 3, kind: output, shape index: {1}]
  %4 = xla_tuple %s2, %s3
  %s5 = sld [smem:[#allocation0]]
  $region34: #{tpu_custom_call.1} parent=0
    _
  %s7 = ssub.s32 1, %s5
  %s8 = scalar_select 0, %s7, %s5
  $region1: #{tpu_custom_call.1} parent=0
    #allocation2 [shape = 'u8[2048]{0}', space=vmem, size = 0x800, scoped, tag = 'input window, operand 0, single buffered']
    #allocation3 [shape = 's32[1]{0}', space=sflag, size = 0x4, scoped, tag = 'scoped memory for tpu_custom_call.1']
    #allocation4 [shape = 's32[1]{0}', space=sflag, size = 0x4, scoped, tag = 'scoped memory for tpu_custom_call.1']
    #allocation5 [shape = 'u8[2048]{0}', space=vmem, size = 0x800, scoped, tag = 'input window, operand 1, single buffered']
    #allocation6 [shape = 's32[1]{0}', space=sflag, size = 0x4, scoped, tag = 'scoped memory for tpu_custom_call.1']
    #allocation7 [shape = 'u8[1024]{0}', space=vmem, size = 0x400, scoped, tag = 'output window, operand 0, single buffered']
    #allocation8 [shape = 'u8[1024]{0}', space=vmem, size = 0x400, scoped, tag = 'output window, operand 1, single buffered']
    #allocation9 [shape = 's32[1]{0}', space=sflag, size = 0x4, scoped, tag = 'scoped memory for tpu_custom_call.1']
    %9 = vsyncpa [#allocation3], 0
    %10 = vsyncpa [#allocation6], 0
    %11 = vsyncpa [#allocation4], 0
    %12 = vsyncpa [#allocation9], 0
    // Predicated region
    $region2: #{tpu_custom_call.1} parent=1 // pred_check
      _
    $region3: #{tpu_custom_call.1} parent=1 // pred_check_branch
      %14 = sbr.rel (0) target = $region5
    $region4: #{tpu_custom_call.1} parent=1 // pred_region
      %s16 = ssub.s32 64, 64
      %17 = vsyncadd [#allocation3], %s16
      %s19 = sshll.u32 [#allocation2], 4
      %s20 = int_to_ptr.vmem [resolvable:$true] %s19
      %22 = dma.hbm_to_vmem [thread:$0]  %s0, 64, %s20, [#allocation3]
    $region5: #{tpu_custom_call.1} parent=1 // pred_fallthru
      _
    // Predicated region
    $region6: #{tpu_custom_call.1} parent=1 // pred_check
      _
    $region7: #{tpu_custom_call.1} parent=1 // pred_check_branch
      %24 = sbr.rel (0) target = $region9
    $region8: #{tpu_custom_call.1} parent=1 // pred_region
      %s26 = ssub.s32 64, 64
      %27 = vsyncadd [#allocation6], %s26
      %s29 = sshll.u32 [#allocation5], 4
      %s30 = int_to_ptr.vmem [resolvable:$true] %s29
      %32 = dma.hbm_to_vmem [thread:$0]  %s1, 64, %s30, [#allocation6]
    $region9: #{tpu_custom_call.1} parent=1 // pred_fallthru
      _
    // Predicated region
    $region10: #{tpu_custom_call.1} parent=1 // pred_check
      _
    $region11: #{tpu_custom_call.1} parent=1 // pred_check_branch
      %34 = sbr.rel (0) target = $region13
    $region12: #{tpu_custom_call.1} parent=1 // pred_region
      %35 = dma.done [#allocation3], 64
    $region13: #{tpu_custom_call.1} parent=1 // pred_fallthru
      _
    // Predicated region
    $region14: #{tpu_custom_call.1} parent=1 // pred_check
      _
    $region15: #{tpu_custom_call.1} parent=1 // pred_check_branch
      %37 = sbr.rel (0) target = $region17
    $region16: #{tpu_custom_call.1} parent=1 // pred_region
      %38 = dma.done [#allocation6], 64
    $region17: #{tpu_custom_call.1} parent=1 // pred_fallthru
      _
    %v39 = vld [vmem:[#allocation2] sm:$0xf]
    %v40 = vmul.f32 %v39, %v39
    %vm41 = vcmask 257024
    %v42 = vsel %vm41, %v40, 0.0
    %43 = vadd.xlane.f32.xlu0 %v42
    %v44 = vpop.xlane.xlu0 %43
    %v45 = vmax.f32 %v44, 1e-24
    %v46 = vrsqrt.pop %v45
    %v47 = vmul.f32 %v39, %v46
    %v48 = vpack.c.bf16 %v47, %v47
    %vm49 = vcmask 254976
    %50 = vst.msk [vmem:[#allocation7] sm:$0x3] %vm49, %v48
    %v51 = vld [vmem:[#allocation5] sm:$0xf]
    %v52 = vmul.f32 %v51, %v51
    %v53 = vsel %vm41, %v52, 0.0
    %54 = vadd.xlane.f32.xlu0 %v53
    %v55 = vpop.xlane.xlu0 %54
    %v56 = vmax.f32 %v55, 1e-24
    %v57 = vrsqrt.pop %v56
    %v58 = vmul.f32 %v51, %v57
    %v59 = vpack.c.bf16 %v58, %v58
    %60 = vst.msk [vmem:[#allocation8] sm:$0x3] %vm49, %v59
    // Predicated region
    $region18: #{tpu_custom_call.1} parent=1 // pred_check
      _
    $region19: #{tpu_custom_call.1} parent=1 // pred_check_branch
      %62 = sbr.rel (0) target = $region21
    $region20: #{tpu_custom_call.1} parent=1 // pred_region
      %s64 = ssub.s32 32, 32
      %65 = vsyncadd [#allocation4], %s64
      %s67 = sshll.u32 [#allocation7], 4
      %s68 = int_to_ptr.vmem [resolvable:$true] %s67
      %70 = dma.vmem_to_hbm [thread:$0]  %s68, 32, %s2, [#allocation4]
    $region21: #{tpu_custom_call.1} parent=1 // pred_fallthru
      _
    // Predicated region
    $region22: #{tpu_custom_call.1} parent=1 // pred_check
      _
    $region23: #{tpu_custom_call.1} parent=1 // pred_check_branch
      %72 = sbr.rel (0) target = $region25
    $region24: #{tpu_custom_call.1} parent=1 // pred_region
      %s74 = ssub.s32 32, 32
      %75 = vsyncadd [#allocation9], %s74
      %s77 = sshll.u32 [#allocation8], 4
      %s78 = int_to_ptr.vmem [resolvable:$true] %s77
      %80 = dma.vmem_to_hbm [thread:$0]  %s78, 32, %s3, [#allocation9]
    $region25: #{tpu_custom_call.1} parent=1 // pred_fallthru
      _
    // Predicated region
    $region26: #{tpu_custom_call.1} parent=1 // pred_check
      _
    $region27: #{tpu_custom_call.1} parent=1 // pred_check_branch
      %82 = sbr.rel (0) target = $region29
    $region28: #{tpu_custom_call.1} parent=1 // pred_region
      %83 = dma.done [#allocation4], 32
    $region29: #{tpu_custom_call.1} parent=1 // pred_fallthru
      _
    // Predicated region
    $region30: #{tpu_custom_call.1} parent=1 // pred_check
      _
    $region31: #{tpu_custom_call.1} parent=1 // pred_check_branch
      %85 = sbr.rel (0) target = $region33
    $region32: #{tpu_custom_call.1} parent=1 // pred_region
      %86 = dma.done [#allocation9], 32
    $region33: #{tpu_custom_call.1} parent=1 // pred_fallthru
      _
    %87 = vsyncpa [#allocation3], 1
    %88 = vsyncpa [#allocation6], 1
    %89 = vsyncpa [#allocation4], 1
    %90 = vsyncpa [#allocation9], 1

</llo_original>
